<compile_context>
chip_gen: v5e
topology: v5e:2x2
jax: 0.10.0
libtpu: 0.0.40
codegen_flags: <defaults>
</compile_context>

<pallas_src>
import functools

import jax
import jax.numpy as jnp
from jax.experimental import pallas as pl
from jax.experimental.pallas import tpu as pltpu


def _round_up(x: int, m: int) -> int:
    return ((x + m - 1) // m) * m


def _cdiv(a: int, b: int) -> int:
    return (a + b - 1) // b


def _vmem_limit_bytes() -> int:
    """3/4 of physical VMEM (fallback 64 MiB -> 48 MiB limit), capped at 112 MiB."""
    cap = 64 * 1024 * 1024
    try:
        info = pltpu.get_tpu_info()
        cap = int(getattr(info, "vmem_capacity_bytes", cap) or cap)
    except Exception:
        pass
    return int(min(cap * 3 // 4, 112 * 1024 * 1024))


def _vmem_estimate(tn: int, dp: int, n_blocks: int, wbytes: int, resident: bool) -> int:
    """Rough VMEM budget for one token tile (conservative: assume 2x buffering)."""
    out_bufs = 2 * tn * dp * 4                       # double-buffered residual/out tile
    vecs = n_blocks * 8 * dp * 4                     # packed LN/bias vectors (sublane pad)
    if resident:
        wts = 2 * n_blocks * 2 * dp * dp * wbytes    # all L weight pairs, resident
    else:
        wts = 2 * 2 * dp * dp * wbytes               # double-buffered W1+W2 blocks
    interm = 4 * tn * dp * 4                         # ln / z / y / headroom
    return out_bufs + vecs + wts + interm


def resnet_kernel(x_hbm, vecs_ref, w1_ref, w2_ref, out_ref, seed_sem, *,
                  eps, d_valid, token_tile, weights_resident):
    """One (token_tile, block) grid step of the residual MLP stack.

    Grid = (num_token_tiles [parallel], n_blocks [arbitrary/innermost]).
    out_ref holds the running residual stream for the current token tile and stays
    VMEM-resident across all block steps (its index_map ignores the block axis).
    """
    t = pl.program_id(0)
    blk = pl.program_id(1)

    # First block for this token tile: seed the residual stream straight from HBM.
    @pl.when(blk == 0)
    def _():
        cp = pltpu.make_async_copy(
            x_hbm.at[pl.ds(t * token_tile, token_tile), :], out_ref, seed_sem)
        cp.start()
        cp.wait()

    h = out_ref[...]                                  # (TN, Dp) f32 residual stream

    vec = vecs_ref[blk]                               # (4, Dp): gamma, beta, b1, b2
    gamma, beta = vec[0:1, :], vec[1:2, :]
    b1, b2 = vec[2:3, :], vec[3:4, :]

    # --- LayerNorm over the true feature width (padded lanes masked out) ---
    d_pad = h.shape[-1]
    inv_d = 1.0 / d_valid
    if d_pad != d_valid:
        lane = jax.lax.broadcasted_iota(jnp.int32, (1, d_pad), 1)
        mask = (lane < d_valid).astype(jnp.float32)
        mean = jnp.sum(h * mask, axis=-1, keepdims=True) * inv_d
        centered = (h - mean) * mask
    else:
        mean = jnp.sum(h, axis=-1, keepdims=True) * inv_d
        centered = h - mean
    var = jnp.sum(centered * centered, axis=-1, keepdims=True) * inv_d
    ln = centered * jax.lax.rsqrt(var + eps) * gamma + beta

    # --- MLP: Linear -> ReLU -> (Dropout = identity in eval) -> Linear ---
    w1 = w1_ref[blk] if weights_resident else w1_ref[...]
    w2 = w2_ref[blk] if weights_resident else w2_ref[...]
    mm_dtype = w1.dtype                               # bf16 by default (MXU-native)
    z = jnp.dot(ln.astype(mm_dtype), w1, preferred_element_type=jnp.float32) + b1
    z = jnp.maximum(z, 0.0)
    y = jnp.dot(z.astype(mm_dtype), w2, preferred_element_type=jnp.float32) + b2

    # --- residual add, carried in out_ref ---
    out_ref[...] = h + y


def resnet_forward(x, params, *, eps=1e-5, token_tile=1024,
                   matmul_dtype=jnp.bfloat16, weights_resident=None):
    """Pallas forward of the ResNet module. x: (..., d_block)."""
    orig_shape = x.shape
    D = orig_shape[-1]
    L = params["w1"].shape[0]

    xf = x.reshape(-1, D).astype(jnp.float32)
    N = xf.shape[0]

    # Lane-dense feature axis (pad to a multiple of 128; LN is masked in-kernel).
    Dp = _round_up(D, 128)

    wbytes = jnp.dtype(matmul_dtype).itemsize
    unit = 16 if wbytes < 4 else 8                    # sublane packing of MXU inputs

    # Token tile: as large as allowed, but >= 2 tiles so a second TC (v7x) has work.
    TN = max(unit, min(token_tile, _round_up(N, unit)))
    if TN >= 2 * unit and _cdiv(N, TN) < 2:
        TN = max(unit, _round_up(_cdiv(N, 2), unit))

    vmem_limit = _vmem_limit_bytes()
    budget = int(vmem_limit * 0.85)
    if weights_resident is None:
        weights_resident = _vmem_estimate(TN, Dp, L, wbytes, True) <= budget
    while TN > unit and _vmem_estimate(TN, Dp, L, wbytes, weights_resident) > budget:
        TN = max(unit, _round_up(TN // 2, unit))

    Np = _round_up(N, TN)
    xf = jnp.pad(xf, ((0, Np - N), (0, Dp - D)))

    # Pack gamma/beta/b1/b2 -> (L, 4, Dp) f32 (kept VMEM-resident, loaded once).
    vecs = jnp.stack([params["gamma"], params["beta"], params["b1"], params["b2"]],
                     axis=1).astype(jnp.float32)
    vecs = jnp.pad(vecs, ((0, 0), (0, 0), (0, Dp - D)))

    # Pad + cast weights (bf16 by default: MXU-native rate, half the weight DMA).
    pad_w = ((0, 0), (0, Dp - D), (0, Dp - D))
    w1 = jnp.pad(params["w1"], pad_w).astype(matmul_dtype)
    w2 = jnp.pad(params["w2"], pad_w).astype(matmul_dtype)

    if weights_resident:
        # Whole (L, Dp, Dp) stack loaded once and kept resident across the grid.
        w_spec = pl.BlockSpec((L, Dp, Dp), lambda t, b: (0, 0, 0))
    else:
        # Streamed per block (auto double-buffered by the pipeline).
        w_spec = pl.BlockSpec((None, Dp, Dp), lambda t, b: (b, 0, 0))

    kernel = functools.partial(resnet_kernel, eps=eps, d_valid=D, token_tile=TN,
                               weights_resident=weights_resident)

    out = pl.pallas_call(
        kernel,
        out_shape=jax.ShapeDtypeStruct((Np, Dp), jnp.float32),
        grid_spec=pltpu.PrefetchScalarGridSpec(
            num_scalar_prefetch=0,
            grid=(Np // TN, L),                                   # blocks innermost
            in_specs=[
                pl.BlockSpec(memory_space=pl.ANY),                # x stays in HBM
                pl.BlockSpec((L, 4, Dp), lambda t, b: (0, 0, 0)), # packed LN/bias vectors
                w_spec,                                           # W1
                w_spec,                                           # W2
            ],
            out_specs=pl.BlockSpec((TN, Dp), lambda t, b: (t, 0)),  # residual stream/output
            scratch_shapes=[pltpu.SemaphoreType.DMA(())],
        ),
        compiler_params=pltpu.CompilerParams(
            # Block axis carries the residual stream -> must stay sequential.
            dimension_semantics=("parallel", "arbitrary"),
            vmem_limit_bytes=vmem_limit),
    )(xf, vecs, w1, w2)

    return out[:N, :D].reshape(orig_shape).astype(x.dtype)


def init_params(key, d_block, n_blocks):
    """Matches ResNet.reset_parameters: rsqrt-uniform Linear init, default LN affine."""
    ks = jax.random.split(key, 4 * n_blocks)

    def rsqrt_uniform(k, shape, d):
        b = d ** -0.5
        return jax.random.uniform(k, shape, jnp.float32, -b, b)

    w1 = jnp.stack([rsqrt_uniform(ks[4 * i + 0], (d_block, d_block), d_block)
                    for i in range(n_blocks)])
    b1 = jnp.stack([rsqrt_uniform(ks[4 * i + 1], (d_block,), d_block)
                    for i in range(n_blocks)])
    w2 = jnp.stack([rsqrt_uniform(ks[4 * i + 2], (d_block, d_block), d_block)
                    for i in range(n_blocks)])
    b2 = jnp.stack([rsqrt_uniform(ks[4 * i + 3], (d_block,), d_block)
                    for i in range(n_blocks)])
    return {
        "gamma": jnp.ones((n_blocks, d_block), jnp.float32),
        "beta": jnp.zeros((n_blocks, d_block), jnp.float32),
        "w1": w1, "b1": b1, "w2": w2, "b2": b2,
    }


def reference_forward(x, p, eps=1e-5, matmul_dtype=jnp.bfloat16):
    """Pure-JAX reference mirroring the PyTorch forward (eval mode / dropout p=0),
    with the matmul inputs cast to the same dtype the kernel feeds the MXU."""
    D = x.shape[-1]
    h = x.reshape(-1, D).astype(jnp.float32)
    L = p["w1"].shape[0]
    for l in range(L):
        mean = h.mean(-1, keepdims=True)
        var = jnp.mean((h - mean) ** 2, axis=-1, keepdims=True)
        ln = (h - mean) * jax.lax.rsqrt(var + eps) * p["gamma"][l] + p["beta"][l]
        z = jnp.dot(ln.astype(matmul_dtype), p["w1"][l].astype(matmul_dtype),
                    preferred_element_type=jnp.float32) + p["b1"][l]
        z = jnp.maximum(z, 0.0)
        y = jnp.dot(z.astype(matmul_dtype), p["w2"][l].astype(matmul_dtype),
                    preferred_element_type=jnp.float32) + p["b2"][l]
        h = h + y
    return h.reshape(x.shape)


if __name__ == "__main__":
    key = jax.random.PRNGKey(0)
    kx, kp, kx2, kp2 = jax.random.split(key, 4)

    # Case 1: lane-aligned d_block, two token tiles (exercises the parallel token
    # axis, resident-weight path, bf16 MXU path).
    B, S, D = 2, 16, 128
    n_blocks = 3
    x = jax.random.normal(kx, (B, S, D), dtype=jnp.float32)
    params = init_params(kp, D, n_blocks)

    out = jax.block_until_ready(resnet_forward(x, params))
    ref = reference_forward(x, params)
    assert out.shape == x.shape
    assert jnp.allclose(out, ref, atol=5e-3, rtol=5e-3), \
        float(jnp.max(jnp.abs(out - ref)))

    # Case 2: non-lane-multiple d_block (padded to 128, masked LN) + streamed weights.
    B2, S2, D2 = 2, 8, 32
    x2 = jax.random.normal(kx2, (B2, S2, D2), dtype=jnp.float32)
    params2 = init_params(kp2, D2, 2)

    out2 = jax.block_until_ready(resnet_forward(x2, params2, weights_resident=False))
    ref2 = reference_forward(x2, params2)
    assert out2.shape == x2.shape
    assert jnp.allclose(out2, ref2, atol=5e-3, rtol=5e-3), \
        float(jnp.max(jnp.abs(out2 - ref2)))

    print("KERNEL_OK")
</pallas_src>

<mosaic_0001>
module attributes {stable_mosaic.version = 11 : i64} {
  func.func @resnet_kernel(%arg0: i32, %arg1: i32, %arg2: memref<32x128xf32, #tpu.memory_space<any>>, %arg3: memref<3x4x128xf32, #tpu.memory_space<vmem>>, %arg4: memref<3x128x128xbf16, #tpu.memory_space<vmem>>, %arg5: memref<3x128x128xbf16, #tpu.memory_space<vmem>>, %arg6: memref<16x128xf32, #tpu.memory_space<vmem>>, %arg7: memref<!tpu.dma_semaphore, #tpu.memory_space<semaphore_mem>>) attributes {dimension_semantics = [#tpu.dimension_semantics<parallel>, #tpu.dimension_semantics<arbitrary>], iteration_bounds = array<i64: 2, 3>, scalar_prefetch = 0 : i64, scratch_operands = 1 : i64, tpu.core_type = #tpu.core_type<tc>, window_params = [{}, {pipeline_mode = #tpu.pipeline_mode<synchronous>, transform_indices = @transform_1, window_bounds = array<i64: 3, 4, 128>}, {pipeline_mode = #tpu.pipeline_mode<synchronous>, transform_indices = @transform_2, window_bounds = array<i64: 3, 128, 128>}, {pipeline_mode = #tpu.pipeline_mode<synchronous>, transform_indices = @transform_3, window_bounds = array<i64: 3, 128, 128>}, {transform_indices = @transform_4, window_bounds = array<i64: 16, 128>}]} {
    %c0_i32 = arith.constant 0 : i32
    %0 = arith.cmpi eq, %arg1, %c0_i32 : i32
    %1 = arith.extui %0 : i1 to i32
    %c0_i32_0 = arith.constant 0 : i32
    %2 = arith.cmpi ne, %1, %c0_i32_0 : i32
    scf.if %2 {
      %c16_i32 = arith.constant 16 : i32
      %49 = arith.muli %arg0, %c16_i32 : i32
      %c0_i32_17 = arith.constant 0 : i32
      %50 = tpu.memref_slice %arg2[%49, %c0_i32_17] : memref<32x128xf32, #tpu.memory_space<any>> -> memref<16x128xf32, #tpu.memory_space<any>>
      tpu.enqueue_dma source(%50 : memref<16x128xf32, #tpu.memory_space<any>>) target(%arg6 : memref<16x128xf32, #tpu.memory_space<vmem>>) target_semaphore(%arg7 : memref<!tpu.dma_semaphore, #tpu.memory_space<semaphore_mem>>)
      %c0_i32_18 = arith.constant 0 : i32
      %51 = tpu.memref_slice %arg2[%49, %c0_i32_18] : memref<32x128xf32, #tpu.memory_space<any>> -> memref<16x128xf32, #tpu.memory_space<any>>
      tpu.wait_dma2 semaphore(%arg7 : memref<!tpu.dma_semaphore, #tpu.memory_space<semaphore_mem>>) src(%51 : memref<16x128xf32, #tpu.memory_space<any>>) dst(%arg6 : memref<16x128xf32, #tpu.memory_space<vmem>>)
    } else {
    }
    %c0 = arith.constant 0 : index
    %c0_1 = arith.constant 0 : index
    %3 = vector.load %arg6[%c0, %c0_1] : memref<16x128xf32, #tpu.memory_space<vmem>>, vector<16x128xf32>
    %4 = arith.index_cast %arg1 : i32 to index
    %c0_2 = arith.constant 0 : index
    %c0_3 = arith.constant 0 : index
    %5 = vector.load %arg3[%4, %c0_2, %c0_3] : memref<3x4x128xf32, #tpu.memory_space<vmem>>, vector<1x4x128xf32>
    %6 = vector.shape_cast %5 : vector<1x4x128xf32> to vector<4x128xf32>
    %7 = vector.extract_strided_slice %6 {offsets = [0, 0], sizes = [1, 128], strides = [1, 1]} : vector<4x128xf32> to vector<1x128xf32>
    %8 = vector.extract_strided_slice %6 {offsets = [1, 0], sizes = [1, 128], strides = [1, 1]} : vector<4x128xf32> to vector<1x128xf32>
    %9 = vector.extract_strided_slice %6 {offsets = [2, 0], sizes = [1, 128], strides = [1, 1]} : vector<4x128xf32> to vector<1x128xf32>
    %10 = vector.extract_strided_slice %6 {offsets = [3, 0], sizes = [1, 128], strides = [1, 1]} : vector<4x128xf32> to vector<1x128xf32>
    %cst = arith.constant dense<0.000000e+00> : vector<16xf32>
    %11 = vector.multi_reduction <add>, %3, %cst [1] : vector<16x128xf32> to vector<16xf32>
    %12 = vector.shape_cast %11 : vector<16xf32> to vector<16x1xf32>
    %cst_4 = arith.constant 7.812500e-03 : f32
    %13 = vector.broadcast %cst_4 : f32 to vector<16x1xf32>
    %14 = arith.mulf %12, %13 : vector<16x1xf32>
    %15 = vector.broadcast %14 : vector<16x1xf32> to vector<16x128xf32>
    %16 = arith.subf %3, %15 : vector<16x128xf32>
    %17 = arith.mulf %16, %16 : vector<16x128xf32>
    %cst_5 = arith.constant dense<0.000000e+00> : vector<16xf32>
    %18 = vector.multi_reduction <add>, %17, %cst_5 [1] : vector<16x128xf32> to vector<16xf32>
    %19 = vector.shape_cast %18 : vector<16xf32> to vector<16x1xf32>
    %cst_6 = arith.constant 7.812500e-03 : f32
    %20 = vector.broadcast %cst_6 : f32 to vector<16x1xf32>
    %21 = arith.mulf %19, %20 : vector<16x1xf32>
    %cst_7 = arith.constant 9.99999974E-6 : f32
    %22 = vector.broadcast %cst_7 : f32 to vector<16x1xf32>
    %23 = arith.addf %21, %22 : vector<16x1xf32>
    %24 = math.rsqrt %23 : vector<16x1xf32>
    %25 = vector.broadcast %24 : vector<16x1xf32> to vector<16x128xf32>
    %26 = arith.mulf %16, %25 : vector<16x128xf32>
    %27 = vector.broadcast %7 : vector<1x128xf32> to vector<16x128xf32>
    %28 = arith.mulf %26, %27 : vector<16x128xf32>
    %29 = vector.broadcast %8 : vector<1x128xf32> to vector<16x128xf32>
    %30 = arith.addf %28, %29 : vector<16x128xf32>
    %31 = arith.index_cast %arg1 : i32 to index
    %c0_8 = arith.constant 0 : index
    %c0_9 = arith.constant 0 : index
    %32 = vector.load %arg4[%31, %c0_8, %c0_9] : memref<3x128x128xbf16, #tpu.memory_space<vmem>>, vector<1x128x128xbf16>
    %33 = vector.shape_cast %32 : vector<1x128x128xbf16> to vector<128x128xbf16>
    %34 = arith.index_cast %arg1 : i32 to index
    %c0_10 = arith.constant 0 : index
    %c0_11 = arith.constant 0 : index
    %35 = vector.load %arg5[%34, %c0_10, %c0_11] : memref<3x128x128xbf16, #tpu.memory_space<vmem>>, vector<1x128x128xbf16>
    %36 = vector.shape_cast %35 : vector<1x128x128xbf16> to vector<128x128xbf16>
    %37 = arith.truncf %30 : vector<16x128xf32> to vector<16x128xbf16>
    %cst_12 = arith.constant dense<0.000000e+00> : vector<16x128xf32>
    %38 = tpu.matmul %37, %33, %cst_12 {dimension_numbers = #tpu.dot_dimension_numbers<[1], [0], [0], [1], [0, 0, 1, 1], [], []>} : vector<16x128xbf16>, vector<128x128xbf16>, vector<16x128xf32> -> vector<16x128xf32>
    %39 = vector.broadcast %9 : vector<1x128xf32> to vector<16x128xf32>
    %40 = arith.addf %38, %39 : vector<16x128xf32>
    %cst_13 = arith.constant 0.000000e+00 : f32
    %41 = vector.broadcast %cst_13 : f32 to vector<16x128xf32>
    %42 = arith.maximumf %40, %41 : vector<16x128xf32>
    %43 = arith.truncf %42 : vector<16x128xf32> to vector<16x128xbf16>
    %cst_14 = arith.constant dense<0.000000e+00> : vector<16x128xf32>
    %44 = tpu.matmul %43, %36, %cst_14 {dimension_numbers = #tpu.dot_dimension_numbers<[1], [0], [0], [1], [0, 0, 1, 1], [], []>} : vector<16x128xbf16>, vector<128x128xbf16>, vector<16x128xf32> -> vector<16x128xf32>
    %45 = vector.broadcast %10 : vector<1x128xf32> to vector<16x128xf32>
    %46 = arith.addf %44, %45 : vector<16x128xf32>
    %47 = arith.addf %3, %46 : vector<16x128xf32>
    %c0_15 = arith.constant 0 : index
    %c0_16 = arith.constant 0 : index
    %48 = vector.load %arg6[%c0_15, %c0_16] : memref<16x128xf32, #tpu.memory_space<vmem>>, vector<16x128xf32>
    tpu.vector_store %arg6[%c0_15, %c0_16], %47 {strides = array<i32>} : memref<16x128xf32, #tpu.memory_space<vmem>>, vector<16x128xf32>,
    return
  }
  func.func @transform_1(%arg0: i32, %arg1: i32) -> (i32, i32, i32) {
    %c0_i32 = arith.constant 0 : i32
    %c0_i32_0 = arith.constant 0 : i32
    %c0_i32_1 = arith.constant 0 : i32
    %c0_i32_2 = arith.constant 0 : i32
    return %c0_i32, %c0_i32_0, %c0_i32_1 : i32, i32, i32
  }
  func.func @transform_2(%arg0: i32, %arg1: i32) -> (i32, i32, i32) {
    %c0_i32 = arith.constant 0 : i32
    %c0_i32_0 = arith.constant 0 : i32
    %c0_i32_1 = arith.constant 0 : i32
    %c0_i32_2 = arith.constant 0 : i32
    return %c0_i32, %c0_i32_0, %c0_i32_1 : i32, i32, i32
  }
  func.func @transform_3(%arg0: i32, %arg1: i32) -> (i32, i32, i32) {
    %c0_i32 = arith.constant 0 : i32
    %c0_i32_0 = arith.constant 0 : i32
    %c0_i32_1 = arith.constant 0 : i32
    %c0_i32_2 = arith.constant 0 : i32
    return %c0_i32, %c0_i32_0, %c0_i32_1 : i32, i32, i32
  }
  func.func @transform_4(%arg0: i32, %arg1: i32) -> (i32, i32) {
    %c0_i32 = arith.constant 0 : i32
    %c0_i32_0 = arith.constant 0 : i32
    return %arg0, %c0_i32 : i32, i32
  }
}

</mosaic_0001>

<llo_original>
// kernel: tpu_custom_call.1
$region0: #{tpu_custom_call.1}
  #allocation0 [shape = 'u32[]', space=smem, size = 0x4, offset = 0x4, fixed_abs, tag = 'smem constant byte address 0x4 - core index']
  #allocation1 [shape = 'u32[72,128]{1,0:T(1,128)}', space=vmem, size = 0x9000, scoped, tag = 'internal scratch']
  #allocation2 [shape = 's32[1]{0}', space=sflag, size = 0x4, scoped, tag = 'scratch operand']
  #allocation10 [shape = 's32[]', space=sflag, size = 0x4, offset = 0, fixed_abs, tag = 'sflag constant byte address 0x0 - dummy sync flag']
  #allocation11 [shape = 's32[]', space=sflag, size = 0x4, offset = 0, fixed_abs, tag = 'sflag constant byte address 0x0 - dummy sync flag']
  #allocation12 [shape = 'u32[]', space=smem, size = 0x4, offset = 0x44, fixed_abs, tag = 'smem constant byte address 0x44 - assertion arg 0']
  #allocation13 [shape = 'u32[]', space=smem, size = 0x4, offset = 0x48, fixed_abs, tag = 'smem constant byte address 0x48 - assertion arg 1']
  %s0 = inlined_call_operand.hbm [shape: f32[32,128], index: 0, kind: input, shape index: {}]
  %s1 = inlined_call_operand.hbm [shape: f32[3,4,128], index: 1, kind: input, shape index: {}]
  %s2 = inlined_call_operand.hbm [shape: bf16[3,128,128], index: 2, kind: input, shape index: {}]
  %s3 = inlined_call_operand.hbm [shape: bf16[3,128,128], index: 3, kind: input, shape index: {}]
  %s4 = inlined_call_operand.hbm [shape: f32[32,128], index: 4, kind: output, shape index: {}]
  %s5 = sld [smem:[#allocation0]]
  $region65: #{tpu_custom_call.1} parent=0
    _
  %s7 = ssub.s32 1, %s5
  %s8 = scalar_select 0, %s7, %s5
  $region1: #{tpu_custom_call.1} parent=0
    #allocation3 [shape = 'u8[6144]{0}', space=vmem, size = 0x1800, scoped, tag = 'input window, operand 1, single buffered']
    #allocation4 [shape = 's32[2]{0}', space=sflag, size = 0x8, scoped, tag = 'scoped memory for tpu_custom_call.1']
    #allocation5 [shape = 's32[2]{0}', space=sflag, size = 0x8, scoped, tag = 'scoped memory for tpu_custom_call.1']
    #allocation6 [shape = 'u8[98304]{0}', space=vmem, size = 0x18000, scoped, tag = 'input window, operand 2, single buffered']
    #allocation7 [shape = 's32[1]{0}', space=sflag, size = 0x4, scoped, tag = 'scoped memory for tpu_custom_call.1']
    #allocation8 [shape = 'u8[98304]{0}', space=vmem, size = 0x18000, scoped, tag = 'input window, operand 3, single buffered']
    #allocation9 [shape = 'u8[16384]{0}', space=vmem, size = 0x4000, scoped, tag = 'output window, operand 0']
    %9 = vsyncpa [#allocation4], 0
    %10 = vsyncpa [#allocation7], 0
    %11 = vsyncpa [#allocation5], 0
    %s12 = scalar_lea.sflag [#allocation5], 1
    %13 = vsyncpa %s12, 0
    loop: start=0, step=1, limit=8
    $region2: #{tpu_custom_call.1} parent=1 // loop_pre_header
      _
    $region3: #{tpu_custom_call.1} parent=1 // loop_header
      %s15 = sphi 0, %s19
      %p16 = scmp.ge.s32.totalorder %s15, 8
      %s22 = sphi 0, %s34
      %s23 = sphi 0, %s30
      %s24 = sphi 0, %s22
      %s25 = sphi 0, %s23
      %s26 = sphi 0, %s24
      %s27 = sphi 0, %s25
      %s35 = sphi 0, %s35
      %s37 = sphi 0, %s35
      %s38 = sphi 0, %s37
      %s52 = sphi 0, %s38
      %s56 = sphi 0, %s56
      %s58 = sphi 0, %s56
      %s59 = sphi 0, %s58
      %s73 = sphi 0, %s59
      %s77 = sphi 0, %s77
      %s79 = sphi 0, %s77
      %s80 = sphi 0, %s79
      %s94 = sphi 0, %s80
      %s100 = sphi 0, %s102
      %s103 = sphi 0, %s100
      %s104 = sphi 0, %s103
      %s120 = sphi 0, %s104
    $region4: #{tpu_custom_call.1} parent=1 // loop_header_branch
      %18 = sbr.rel (%p16) target = $region8
    $region5: #{tpu_custom_call.1} parent=1 // loop_body
      %s20 = ssub.s32 %s15, 1
      %s21 = ssub.s32 %s15, 2
      %s28 = sadd.s32 1, %s23
      %p29 = scmp.ge.s32.totalorder %s28, 3
      %s30 = scalar_select %p29, 0, %s28
      %s31 = sadd.s32 1, %s22
      %s32 = scalar_select %p29, %s31, %s22
      %p33 = scmp.ge.s32.totalorder %s32, 2
      %s34 = scalar_select %p33, 0, %s32
      %s36 = sadd.s32 %s35, 1
      %p39 = scmp.eq.s32.totalorder %s15, 5
      %p40 = scmp.ne.s32.totalorder %s35, %s37
      %p41 = scmp.eq.s32.totalorder %s15, 0
      %p42 = por %p40, %p41
      %p43 = scmp.ne.s32.totalorder %s35, %s37
      %p44 = scmp.eq.s32.totalorder %s20, 5
      %p45 = por %p43, %p44
      %p46 = scmp.ne.s32.totalorder %s37, %s38
      %p47 = scmp.eq.s32.totalorder %s20, 0
      %p48 = por %p46, %p47
      %p49 = scmp.ne.s32.totalorder %s37, %s38
      %p50 = scmp.eq.s32.totalorder %s21, 5
      %p51 = por %p49, %p50
      %p53 = scmp.ne.s32.totalorder %s38, %s52
      %p54 = scmp.eq.s32.totalorder %s21, 0
      %p55 = por %p53, %p54
      %s57 = sadd.s32 %s56, 1
      %p60 = scmp.eq.s32.totalorder %s15, 5
      %p61 = scmp.ne.s32.totalorder %s56, %s58
      %p62 = scmp.eq.s32.totalorder %s15, 0
      %p63 = por %p61, %p62
      %p64 = scmp.ne.s32.totalorder %s56, %s58
      %p65 = scmp.eq.s32.totalorder %s20, 5
      %p66 = por %p64, %p65
      %p67 = scmp.ne.s32.totalorder %s58, %s59
      %p68 = scmp.eq.s32.totalorder %s20, 0
      %p69 = por %p67, %p68
      %p70 = scmp.ne.s32.totalorder %s58, %s59
      %p71 = scmp.eq.s32.totalorder %s21, 5
      %p72 = por %p70, %p71
      %p74 = scmp.ne.s32.totalorder %s59, %s73
      %p75 = scmp.eq.s32.totalorder %s21, 0
      %p76 = por %p74, %p75
      %s78 = sadd.s32 %s77, 1
      %p81 = scmp.eq.s32.totalorder %s15, 5
      %p82 = scmp.ne.s32.totalorder %s77, %s79
      %p83 = scmp.eq.s32.totalorder %s15, 0
      %p84 = por %p82, %p83
      %p85 = scmp.ne.s32.totalorder %s77, %s79
      %p86 = scmp.eq.s32.totalorder %s20, 5
      %p87 = por %p85, %p86
      %p88 = scmp.ne.s32.totalorder %s79, %s80
      %p89 = scmp.eq.s32.totalorder %s20, 0
      %p90 = por %p88, %p89
      %p91 = scmp.ne.s32.totalorder %s79, %s80
      %p92 = scmp.eq.s32.totalorder %s21, 5
      %p93 = por %p91, %p92
      %p95 = scmp.ne.s32.totalorder %s80, %s94
      %p96 = scmp.eq.s32.totalorder %s21, 0
      %p97 = por %p95, %p96
      %s98 = ssub.s32 %s22, %s34
      %p99 = scmp.eq.s32.totalorder %s98, 0
      %s101 = sadd.s32 %s100, 1
      %s102 = scalar_select %p99, %s100, %s101
      %p105 = pneg %p99
      %p106 = scmp.eq.s32.totalorder %s15, 5
      %p107 = por %p105, %p106
      %p108 = scmp.ne.s32.totalorder %s100, %s103
      %p109 = scmp.eq.s32.totalorder %s15, 0
      %p110 = por %p108, %p109
      %p111 = scmp.ne.s32.totalorder %s100, %s103
      %p112 = scmp.eq.s32.totalorder %s20, 5
      %p113 = por %p111, %p112
      %p114 = scmp.ne.s32.totalorder %s103, %s104
      %p115 = scmp.eq.s32.totalorder %s20, 0
      %p116 = por %p114, %p115
      %p117 = scmp.ne.s32.totalorder %s103, %s104
      %p118 = scmp.eq.s32.totalorder %s21, 5
      %p119 = por %p117, %p118
      %p121 = scmp.ne.s32.totalorder %s104, %s120
      %p122 = scmp.eq.s32.totalorder %s21, 0
      %p123 = por %p121, %p122
      %p124 = scmp.le.s32.totalorder 1, %s15
      %p125 = scmp.lt.s32.totalorder %s15, 7
      %p126 = pnand %p124, %p125
      %p127 = pneg %p126
      // Predicated region
      $region9: #{tpu_custom_call.1} parent=5 // pred_check
        _
      $region10: #{tpu_custom_call.1} parent=5 // pred_check_branch
        %129 = sbr.rel (%p126) target = $region12
      $region11: #{tpu_custom_call.1} parent=5 // pred_region
        %s130 = ssub.s32 %s15, 1
        // Predicated region
        $region13: #{tpu_custom_call.1} parent=11 // pred_check
          %p131 = pneg %p48
        $region14: #{tpu_custom_call.1} parent=11 // pred_check_branch
          %133 = sbr.rel (%p131) target = $region16
        $region15: #{tpu_custom_call.1} parent=11 // pred_region
          %135 = vsyncadd [#allocation4], 0
          %s136 = sshll.u32 %s1, 4
          %s137 = int_to_ptr.hbm [resolvable:$true] %s136
          %s138 = sshll.u32 [#allocation3], 4
          %s139 = int_to_ptr.vmem [resolvable:$true] %s138
          %144 = dma.hbm_to_vmem [thread:$0]  %s137, 192, %s139, [#allocation4], 64, 64, 4
        $region16: #{tpu_custom_call.1} parent=11 // pred_fallthru
          _
        // Predicated region
        $region17: #{tpu_custom_call.1} parent=11 // pred_check
          %p145 = pneg %p69
        $region18: #{tpu_custom_call.1} parent=11 // pred_check_branch
          %147 = sbr.rel (%p145) target = $region20
        $region19: #{tpu_custom_call.1} parent=11 // pred_region
          %149 = vsyncadd [#allocation7], 0
          %s150 = sshll.u32 %s2, 4
          %s151 = int_to_ptr.hbm [resolvable:$true] %s150
          %s152 = sshll.u32 [#allocation6], 4
          %s153 = int_to_ptr.vmem [resolvable:$true] %s152
          %158 = dma.hbm_to_vmem [thread:$0]  %s151, 3072, %s153, [#allocation7], 64, 64, 4
        $region20: #{tpu_custom_call.1} parent=11 // pred_fallthru
          _
        // Predicated region
        $region21: #{tpu_custom_call.1} parent=11 // pred_check
          %p159 = pneg %p90
        $region22: #{tpu_custom_call.1} parent=11 // pred_check_branch
          %161 = sbr.rel (%p159) target = $region24
        $region23: #{tpu_custom_call.1} parent=11 // pred_region
          %163 = vsyncadd [#allocation7], 0
          %s164 = sshll.u32 %s3, 4
          %s165 = int_to_ptr.hbm [resolvable:$true] %s164
          %s166 = sshll.u32 [#allocation8], 4
          %s167 = int_to_ptr.vmem [resolvable:$true] %s166
          %172 = dma.hbm_to_vmem [thread:$0]  %s165, 3072, %s167, [#allocation7], 64, 64, 4
        $region24: #{tpu_custom_call.1} parent=11 // pred_fallthru
          _
      $region12: #{tpu_custom_call.1} parent=5 // pred_fallthru
        _
      %p173 = scmp.lt.s32.totalorder %s15, 6
      // Predicated region
      $region25: #{tpu_custom_call.1} parent=5 // pred_check
        %p174 = pneg %p173
      $region26: #{tpu_custom_call.1} parent=5 // pred_check_branch
        %176 = sbr.rel (%p174) target = $region28
      $region27: #{tpu_custom_call.1} parent=5 // pred_region
        _
      $region28: #{tpu_custom_call.1} parent=5 // pred_fallthru
        _
      %p177 = scmp.le.s32.totalorder 1, %s15
      %p178 = scmp.lt.s32.totalorder %s15, 7
      %p179 = pnand %p177, %p178
      %p180 = pneg %p179
      // Predicated region
      $region29: #{tpu_custom_call.1} parent=5 // pred_check
        _
      $region30: #{tpu_custom_call.1} parent=5 // pred_check_branch
        %182 = sbr.rel (%p179) target = $region32
      $region31: #{tpu_custom_call.1} parent=5 // pred_region
        %s183 = ssub.s32 %s15, 1
        // Predicated region
        $region33: #{tpu_custom_call.1} parent=31 // pred_check
          %p184 = pneg %p48
        $region34: #{tpu_custom_call.1} parent=31 // pred_check_branch
          %186 = sbr.rel (%p184) target = $region36
        $region35: #{tpu_custom_call.1} parent=31 // pred_region
          %188 = dma.done [#allocation4], 192
        $region36: #{tpu_custom_call.1} parent=31 // pred_fallthru
          _
        // Predicated region
        $region37: #{tpu_custom_call.1} parent=31 // pred_check
          %p189 = pneg %p69
        $region38: #{tpu_custom_call.1} parent=31 // pred_check_branch
          %191 = sbr.rel (%p189) target = $region40
        $region39: #{tpu_custom_call.1} parent=31 // pred_region
          %193 = dma.done [#allocation7], 3072
        $region40: #{tpu_custom_call.1} parent=31 // pred_fallthru
          _
        // Predicated region
        $region41: #{tpu_custom_call.1} parent=31 // pred_check
          %p194 = pneg %p90
        $region42: #{tpu_custom_call.1} parent=31 // pred_check_branch
          %196 = sbr.rel (%p194) target = $region44
        $region43: #{tpu_custom_call.1} parent=31 // pred_region
          %198 = dma.done [#allocation7], 3072
        $region44: #{tpu_custom_call.1} parent=31 // pred_fallthru
          _
        %p199 = pneg %p48
        %p200 = pneg %p45
        %p201 = pneg %p69
        %p202 = pneg %p66
        %p203 = pneg %p90
        %p204 = pneg %p87
        %p205 = pneg %p116
        %p206 = pneg %p113
        %s207 = sand.u32 %s103, 1
        %s208 = scalar_lea.sflag [#allocation5], %s207
        %s209 = sand.u32 %s103, 1
        %s210 = smul.addr %s209, 16
        %s211 = scalar_lea.vmem [#allocation9], %s210
        %s212 = smul.u32 2, %s24
        %p213 = scmp.eq.s32.totalorder %s25, 0
        // Predicated region
        $region45: #{tpu_custom_call.1} parent=31 // pred_check
          %p214 = pneg %p213
        $region46: #{tpu_custom_call.1} parent=31 // pred_check_branch
          %216 = sbr.rel (%p214) target = $region48
        $region47: #{tpu_custom_call.1} parent=31 // pred_region
          %s217 = smul.u32 %s24, 16
          %s218 = scalar_lea.hbm %s0, %s217
          // Predicated region
          $region49: #{tpu_custom_call.1} parent=47 // pred_check
            _
          $region50: #{tpu_custom_call.1} parent=47 // pred_check_branch
            %220 = sbr.rel target = $region52
          $region51: #{tpu_custom_call.1} parent=47 // pred_region
            %221 = sst [smem:[#allocation12]] [#allocation11]
            %222 = sst [smem:[#allocation13]] [#allocation10]
          $region52: #{tpu_custom_call.1} parent=47 // pred_fallthru
            _
          %224 = shalt.err (0)
          %s226 = sshll.u32 %s218, 4
          %s227 = int_to_ptr.hbm [resolvable:$true] %s226
          %s228 = sshll.u32 %s211, 4
          %s229 = int_to_ptr.vmem [resolvable:$true] %s228
          %231 = dma.hbm_to_vmem [thread:$0]  %s227, 256, %s229, [#allocation2]
          %s232 = smul.u32 16, 1
          %s233 = sshll.u32 %s232, 4
          %234 = dma.done [#allocation2], %s233
        $region48: #{tpu_custom_call.1} parent=31 // pred_fallthru
          _
        %v235 = vld [vmem:[%s211] sm:$0xff]
        %v236 = vld [vmem:[%s211 + $0x8] sm:$0xff]
        %s237 = smul.u32 %s25, 4
        %s238 = scalar_lea.vmem [#allocation3], %s237
        %v239 = vld [vmem:[%s238] sm:$0xf]
        %240 = vadd.xlane.f32.xlu0 %v235
        %v241 = vpop.xlane.xlu0 %240
        %242 = vadd.xlane.f32.xlu0 %v236
        %v243 = vpop.xlane.xlu0 %242
        %v244 = vmul.f32 %v241, 0.0078125
        %v245 = vmul.f32 %v243, 0.0078125
        %v246 = vsub.f32 %v235, %v244
        %v247 = vsub.f32 %v236, %v245
        %v248 = vmul.f32 %v246, %v246
        %v249 = vmul.f32 %v247, %v247
        %250 = vadd.xlane.f32.xlu0 %v248
        %v251 = vpop.xlane.xlu0 %250
        %252 = vadd.xlane.f32.xlu0 %v249
        %v253 = vpop.xlane.xlu0 %252
        %v254 = vmul.f32 %v251, 0.0078125
        %v255 = vmul.f32 %v253, 0.0078125
        %v256 = vadd.f32 %v254, 1e-05
        %v257 = vadd.f32 %v255, 1e-05
        %v258 = vrsqrt.pop %v256
        %v259 = vmul.f32 %v258, %v256
        %v260 = vmul.f32 %v259, %v258
        %v261 = vmul.f32 0.5, %v260
        %v262 = vsub.f32 1.5, %v261
        %v263 = vmul.f32 %v258, %v262
        %vm264 = vweird.f32 %v256
        %vm265 = vweird.f32 %v258
        %vm266 = vmor %vm264, %vm265
        %v267 = vsel %vm266, %v258, %v263
        %v268 = vrsqrt.pop %v257
        %v269 = vmul.f32 %v268, %v257
        %v270 = vmul.f32 %v269, %v268
        %v271 = vmul.f32 0.5, %v270
        %v272 = vsub.f32 1.5, %v271
        %v273 = vmul.f32 %v268, %v272
        %vm274 = vweird.f32 %v257
        %vm275 = vweird.f32 %v268
        %vm276 = vmor %vm274, %vm275
        %v277 = vsel %vm276, %v268, %v273
        %v278 = vmul.f32 %v246, %v267
        %v279 = vmul.f32 %v247, %v277
        %v280 = vperm.slane %v239, 0
        %v281 = vmul.f32 %v278, %v280
        %v282 = vmul.f32 %v279, %v280
        %v283 = vperm.slane %v239, 1
        %v284 = vadd.f32 %v281, %v283
        %v285 = vadd.f32 %v282, %v283
        %s286 = smul.u32 %s25, 16
        %s287 = smul.addr %s286, 4
        %s288 = scalar_lea.vmem [#allocation6], %s287
        %v289 = vld [vmem:[%s288] sm:$0xf]
        %v290 = vld [vmem:[%s288 + $0x4] sm:$0xf]
        %v291 = vld [vmem:[%s288 + $0x8] sm:$0xf]
        %v292 = vld [vmem:[%s288 + $0xc] sm:$0xf]
        %v293 = vld [vmem:[%s288 + $0x10] sm:$0xf]
        %v294 = vld [vmem:[%s288 + $0x14] sm:$0xf]
        %v295 = vld [vmem:[%s288 + $0x18] sm:$0xf]
        %v296 = vld [vmem:[%s288 + $0x1c] sm:$0xf]
        %v297 = vld [vmem:[%s288 + $0x20] sm:$0xf]
        %v298 = vld [vmem:[%s288 + $0x24] sm:$0xf]
        %v299 = vld [vmem:[%s288 + $0x28] sm:$0xf]
        %v300 = vld [vmem:[%s288 + $0x2c] sm:$0xf]
        %v301 = vld [vmem:[%s288 + $0x30] sm:$0xf]
        %v302 = vld [vmem:[%s288 + $0x34] sm:$0xf]
        %v303 = vld [vmem:[%s288 + $0x38] sm:$0xf]
        %v304 = vld [vmem:[%s288 + $0x3c] sm:$0xf]
        %s305 = smul.addr %s286, 4
        %s306 = scalar_lea.vmem [#allocation8], %s305
        %v307 = vld [vmem:[%s306] sm:$0xf]
        %v308 = vld [vmem:[%s306 + $0x4] sm:$0xf]
        %v309 = vld [vmem:[%s306 + $0x8] sm:$0xf]
        %v310 = vld [vmem:[%s306 + $0xc] sm:$0xf]
        %v311 = vld [vmem:[%s306 + $0x10] sm:$0xf]
        %v312 = vld [vmem:[%s306 + $0x14] sm:$0xf]
        %v313 = vld [vmem:[%s306 + $0x18] sm:$0xf]
        %v314 = vld [vmem:[%s306 + $0x1c] sm:$0xf]
        %v315 = vld [vmem:[%s306 + $0x20] sm:$0xf]
        %v316 = vld [vmem:[%s306 + $0x24] sm:$0xf]
        %v317 = vld [vmem:[%s306 + $0x28] sm:$0xf]
        %v318 = vld [vmem:[%s306 + $0x2c] sm:$0xf]
        %v319 = vld [vmem:[%s306 + $0x30] sm:$0xf]
        %v320 = vld [vmem:[%s306 + $0x34] sm:$0xf]
        %v321 = vld [vmem:[%s306 + $0x38] sm:$0xf]
        %v322 = vld [vmem:[%s306 + $0x3c] sm:$0xf]
        %v323 = vpack.c.bf16 %v285, %v284
        %v324 = vperm.slane %v239, 2
        %v341 = vunpack.c.l.b16 %v289
        %v342 = vunpack.c.l.b16 %v290
        %v343 = vunpack.c.l.b16 %v291
        %v344 = vunpack.c.l.b16 %v292
        %v345 = vunpack.c.l.b16 %v293
        %v346 = vunpack.c.l.b16 %v294
        %v347 = vunpack.c.l.b16 %v295
        %v348 = vunpack.c.l.b16 %v296
        %v349 = vunpack.c.l.b16 %v297
        %v350 = vunpack.c.l.b16 %v298
        %v351 = vunpack.c.l.b16 %v299
        %v352 = vunpack.c.l.b16 %v300
        %v353 = vunpack.c.l.b16 %v301
        %v354 = vunpack.c.l.b16 %v302
        %v355 = vunpack.c.l.b16 %v303
        %v356 = vunpack.c.l.b16 %v304
        %v357 = vpack.c.b16 %v342, %v341
        %v358 = vpack.c.b16 %v344, %v343
        %v359 = vpack.c.b16 %v346, %v345
        %v360 = vpack.c.b16 %v348, %v347
        %v361 = vpack.c.b16 %v350, %v349
        %v362 = vpack.c.b16 %v352, %v351
        %v363 = vpack.c.b16 %v354, %v353
        %v364 = vpack.c.b16 %v356, %v355
        %373 = vmatpush.bf16.msra.mxu0 %v364
        %374 = vmatpush.bf16.msra.mxu0 %v363
        %375 = vmatpush.bf16.msra.mxu0 %v362
        %376 = vmatpush.bf16.msra.mxu0 %v361
        %377 = vmatpush.bf16.msra.mxu0 %v360
        %378 = vmatpush.bf16.msra.mxu0 %v359
        %379 = vmatpush.bf16.msra.mxu0 %v358
        %380 = vmatpush.bf16.msra.mxu0 %v357
        %381 = vmatmul.bf16.gmra.mxu0 %v323
        %v382 = vpop.f32.mrf.mxu0
        %v383 = vadd.f32 %v324, %v382
        %v384 = vpop.f32.mrf.mxu0
        %v385 = vadd.f32 %v324, %v384
        %386 = vdwg.mxu0
        %v387 = vmax.f32 %v383, 0.0
        %v388 = vmax.f32 %v385, 0.0
        %v389 = vpack.c.bf16 %v388, %v387
        %v390 = vperm.slane %v239, 3
        %v407 = vunpack.c.l.b16 %v307
        %v408 = vunpack.c.l.b16 %v308
        %v409 = vunpack.c.l.b16 %v309
        %v410 = vunpack.c.l.b16 %v310
        %v411 = vunpack.c.l.b16 %v311
        %v412 = vunpack.c.l.b16 %v312
        %v413 = vunpack.c.l.b16 %v313
        %v414 = vunpack.c.l.b16 %v314
        %v415 = vunpack.c.l.b16 %v315
        %v416 = vunpack.c.l.b16 %v316
        %v417 = vunpack.c.l.b16 %v317
        %v418 = vunpack.c.l.b16 %v318
        %v419 = vunpack.c.l.b16 %v319
        %v420 = vunpack.c.l.b16 %v320
        %v421 = vunpack.c.l.b16 %v321
        %v422 = vunpack.c.l.b16 %v322
        %v423 = vpack.c.b16 %v408, %v407
        %v424 = vpack.c.b16 %v410, %v409
        %v425 = vpack.c.b16 %v412, %v411
        %v426 = vpack.c.b16 %v414, %v413
        %v427 = vpack.c.b16 %v416, %v415
        %v428 = vpack.c.b16 %v418, %v417
        %v429 = vpack.c.b16 %v420, %v419
        %v430 = vpack.c.b16 %v422, %v421
        %439 = vmatpush.bf16.msra.mxu0 %v430
        %440 = vmatpush.bf16.msra.mxu0 %v429
        %441 = vmatpush.bf16.msra.mxu0 %v428
        %442 = vmatpush.bf16.msra.mxu0 %v427
        %443 = vmatpush.bf16.msra.mxu0 %v426
        %444 = vmatpush.bf16.msra.mxu0 %v425
        %445 = vmatpush.bf16.msra.mxu0 %v424
        %446 = vmatpush.bf16.msra.mxu0 %v423
        %447 = vmatmul.bf16.gmra.mxu0 %v389
        %v448 = vpop.f32.mrf.mxu0
        %v449 = vadd.f32 %v390, %v448
        %v450 = vpop.f32.mrf.mxu0
        %v451 = vadd.f32 %v390, %v450
        %452 = vdwg.mxu0
        %v453 = vadd.f32 %v235, %v449
        %v454 = vadd.f32 %v236, %v451
        %455 = vst [vmem:[%s211] sm:$0xff] %v453
        %456 = vst [vmem:[%s211 + $0x8] sm:$0xff] %v454
        %s457 = sand.u32 %s103, 1
        %s458 = scalar_lea.sflag [#allocation5], %s457
        %s459 = sand.u32 %s103, 1
        %s460 = smul.addr %s459, 16
        %s461 = scalar_lea.vmem [#allocation9], %s460
        // Predicated region
        $region53: #{tpu_custom_call.1} parent=31 // pred_check
          %p462 = pneg %p113
        $region54: #{tpu_custom_call.1} parent=31 // pred_check_branch
          %464 = sbr.rel (%p462) target = $region56
        $region55: #{tpu_custom_call.1} parent=31 // pred_region
          %s465 = smul.u32 2, %s24
          %467 = vsyncadd %s458, 0
          %s468 = smul.addr %s465, 8
          %s469 = scalar_lea.hbm %s4, %s468
          %s470 = sshll.u32 %s461, 4
          %s471 = int_to_ptr.vmem [resolvable:$true] %s470
          %s472 = sshll.u32 %s469, 4
          %s473 = int_to_ptr.hbm [resolvable:$true] %s472
          %478 = dma.vmem_to_hbm [thread:$0]  %s471, 256, %s473, %s458, 128, 128, 8
        $region56: #{tpu_custom_call.1} parent=31 // pred_fallthru
          _
      $region32: #{tpu_custom_call.1} parent=5 // pred_fallthru
        _
      %p479 = scmp.le.s32.totalorder 2, %s15
      // Predicated region
      $region57: #{tpu_custom_call.1} parent=5 // pred_check
        %p480 = pneg %p479
      $region58: #{tpu_custom_call.1} parent=5 // pred_check_branch
        %482 = sbr.rel (%p480) target = $region60
      $region59: #{tpu_custom_call.1} parent=5 // pred_region
        %s483 = ssub.s32 %s15, 2
        // Predicated region
        $region61: #{tpu_custom_call.1} parent=59 // pred_check
          %p484 = pneg %p119
        $region62: #{tpu_custom_call.1} parent=59 // pred_check_branch
          %486 = sbr.rel (%p484) target = $region64
        $region63: #{tpu_custom_call.1} parent=59 // pred_region
          %s487 = sand.u32 %s104, 1
          %s488 = scalar_lea.sflag [#allocation5], %s487
          %s489 = sand.u32 %s104, 1
          %s490 = smul.addr %s489, 16
          %s491 = scalar_lea.vmem [#allocation9], %s490
          %493 = dma.done %s488, 256
        $region64: #{tpu_custom_call.1} parent=59 // pred_fallthru
          _
      $region60: #{tpu_custom_call.1} parent=5 // pred_fallthru
        _
    $region6: #{tpu_custom_call.1} parent=1 // loop_footer
      %s19 = sadd.s32 1, %s15
    $region7: #{tpu_custom_call.1} parent=1 // loop_footer_branch
      %14 = sbr.rel target = $region3
    $region8: #{tpu_custom_call.1} parent=1 // loop_exit
      _
    %494 = vsyncpa [#allocation4], 1
    %s495 = scalar_lea.sflag [#allocation4], 1
    %496 = vsyncpa %s495, 1
    %497 = vsyncpa [#allocation7], 1
    %498 = vsyncpa [#allocation5], 1
    %s499 = scalar_lea.sflag [#allocation5], 1
    %500 = vsyncpa %s499, 1
  %501 = vsyncmov [#allocation2]
  %s502 = vpop.sfrf %501
  %p503 = scmp.eq.s32.totalorder %s502, 0
  %p504 = pneg %p503
  %506 = shalt.err (%p504)

</llo_original>
